<compile_context>
chip_gen: v5e
topology: v5e:2x2
jax: 0.10.0
libtpu: 0.0.40
codegen_flags: <defaults>
</compile_context>

<pallas_src>
import jax
import jax.numpy as jnp
from jax.experimental import pallas as pl
from jax.experimental.pallas import tpu as pltpu

# Model hyper-params implied by the module.
C_OUT = 64                      # conv1 out_channels
KSIZE = 3                       # conv1 kernel_size
POOL = 2                        # maxpool kernel_size
T_POOL = 5                      # fc1 expects 64 * 5 features
L_CONV = T_POOL * POOL          # 10 = conv output length
L_IN = L_CONV + KSIZE - 1       # 12 = input sequence length
HID = 64                        # fc1 out_features
FEAT = C_OUT * T_POOL           # 320 = flattened feature count
F_PAD = 384                     # 320 rounded up to a multiple of 128 lanes


def _round_up(x, m):
    return (x + m - 1) // m * m


def cnn_kernel(x_ref, we_ref, wo_ref, cb_ref, w1_ref, b1_ref, w2_ref, b2_ref,
               o_ref):
    # Per grid step:
    #   x_ref : (TB, 12)    input rows (channel dim squeezed)
    #   we_ref: (12, 384)   Toeplitz conv weight, even pooled positions
    #   wo_ref: (12, 384)   Toeplitz conv weight, odd pooled positions
    #   cb_ref: (1, 384)    conv bias replicated per pooled timestep (pad = 0)
    #   w1_ref: (384, 64)   fc1 weight (zero rows for the 64 pad columns)
    #   b1_ref: (1, 64)     fc1 bias
    #   w2_ref: (1, 64)     fc2 weight row
    #   b2_ref: (1, 1)      fc2 bias
    #   o_ref : (TB, 1)     sigmoid output
    x = x_ref[...]                                                   # (TB, 12)

    # Conv1d(1->64, k=3) for even / odd output positions as MXU matmuls.
    ce = jnp.dot(x, we_ref[...], preferred_element_type=jnp.float32)  # (TB, 384)
    co = jnp.dot(x, wo_ref[...], preferred_element_type=jnp.float32)  # (TB, 384)

    # MaxPool1d(2) + bias + ReLU fused as pure elementwise VPU ops.
    pooled = jnp.maximum(jnp.maximum(ce, co) + cb_ref[...], 0.0)      # (TB, 384)

    # fc1: one K=384 (320 real + 64 zero-pad) matmul + bias + ReLU.
    h = jnp.dot(pooled, w1_ref[...],
                preferred_element_type=jnp.float32) + b1_ref[...]
    h = jnp.maximum(h, 0.0)                                           # (TB, 64)

    # fc2 as a lane reduction (VPU/XLU) + sigmoid.
    out = jnp.sum(h * w2_ref[...], axis=-1, keepdims=True) + b2_ref[...]
    o_ref[...] = jax.nn.sigmoid(out)                                  # (TB, 1)


def _toeplitz_conv_weight(conv_w, offset):
    """Build W of shape (12, 384) with W[i, c*5+t] = conv_w[c, 0, i - (2t+offset)]
    when 0 <= i - (2t+offset) < 3, else 0; columns >= 320 are zero padding."""
    cw = conv_w[:, 0, :].astype(jnp.float32)                          # (64, 3)
    i = jnp.arange(L_IN)[:, None]                                     # (12, 1)
    t = jnp.arange(T_POOL)[None, :]                                   # (1, 5)
    k = i - (POOL * t + offset)                                       # (12, 5)
    valid = (k >= 0) & (k < KSIZE)
    g = cw[:, jnp.clip(k, 0, KSIZE - 1)]                              # (64, 12, 5)
    g = jnp.where(valid[None, :, :], g, 0.0)
    w = jnp.transpose(g, (1, 0, 2)).reshape(L_IN, FEAT)               # col = c*5+t
    return jnp.pad(w, ((0, 0), (0, F_PAD - FEAT)))                    # (12, 384)


def cnn_forward(x_ncl, conv_w, conv_b, fc1_w, fc1_b, fc2_w, fc2_b, *, tb=2048):
    """x_ncl: (N, 1, 12) like PyTorch.  Weights in PyTorch layouts:
       conv_w (64,1,3), conv_b (64,), fc1_w (64,320), fc1_b (64,),
       fc2_w (1,64), fc2_b (1,)."""
    n = x_ncl.shape[0]
    xs = x_ncl[:, 0, :].astype(jnp.float32)                           # (N, 12)

    # Batch tile: multiple of 8, large enough to amortize the ~0.35us/step
    # pipeline overhead, capped at ~half the rounded batch so the grid keeps
    # >=2 steps (megacore sharding on v7x via dimension_semantics).
    n8 = _round_up(n, 8)
    half = _round_up(max(n8 // 2, 8), 8) if n8 >= 16 else n8
    tb_eff = max(8, min(_round_up(tb, 8), half))
    n_pad = _round_up(n, tb_eff)
    if n_pad != n:
        xs = jnp.pad(xs, ((0, n_pad - n), (0, 0)))
    grid = (n_pad // tb_eff,)

    # Host-side weight prep (PyTorch flatten order: feature = c*5 + t).
    we = _toeplitz_conv_weight(conv_w, 0)                             # (12, 384)
    wo = _toeplitz_conv_weight(conv_w, 1)                             # (12, 384)
    cb = jnp.pad(jnp.repeat(conv_b.astype(jnp.float32), T_POOL).reshape(1, FEAT),
                 ((0, 0), (0, F_PAD - FEAT)))                         # (1, 384)
    w1 = jnp.pad(fc1_w.astype(jnp.float32).T,
                 ((0, F_PAD - FEAT), (0, 0)))                         # (384, 64)
    b1 = fc1_b.reshape(1, HID).astype(jnp.float32)
    w2 = fc2_w.reshape(1, HID).astype(jnp.float32)
    b2 = fc2_b.reshape(1, 1).astype(jnp.float32)

    out = pl.pallas_call(
        cnn_kernel,
        out_shape=jax.ShapeDtypeStruct((n_pad, 1), jnp.float32),
        grid=grid,
        in_specs=[
            pl.BlockSpec((tb_eff, L_IN), lambda i: (i, 0)),           # x tile
            pl.BlockSpec((L_IN, F_PAD), lambda i: (0, 0)),            # conv W even
            pl.BlockSpec((L_IN, F_PAD), lambda i: (0, 0)),            # conv W odd
            pl.BlockSpec((1, F_PAD), lambda i: (0, 0)),               # conv bias
            pl.BlockSpec((F_PAD, HID), lambda i: (0, 0)),             # fc1 w
            pl.BlockSpec((1, HID), lambda i: (0, 0)),                 # fc1 b
            pl.BlockSpec((1, HID), lambda i: (0, 0)),                 # fc2 w
            pl.BlockSpec((1, 1), lambda i: (0, 0)),                   # fc2 b
        ],
        out_specs=pl.BlockSpec((tb_eff, 1), lambda i: (i, 0)),
        compiler_params=pltpu.CompilerParams(
            dimension_semantics=("parallel",),
            vmem_limit_bytes=64 * 1024 * 1024),
    )(xs, we, wo, cb, w1, b1, w2, b2)
    return out[:n]


def ref_forward(x_ncl, conv_w, conv_b, fc1_w, fc1_b, fc2_w, fc2_b):
    """Plain-JAX reference with PyTorch semantics (NCL layout)."""
    n = x_ncl.shape[0]
    xs = x_ncl[:, 0, :]
    patches = jnp.stack([xs[:, k:k + L_CONV] for k in range(KSIZE)], axis=-1)
    conv = jnp.einsum("ntk,ck->nct", patches, conv_w[:, 0, :]) + conv_b[None, :, None]
    conv = jnp.maximum(conv, 0.0)                                     # (N,64,10)
    pooled = conv.reshape(n, C_OUT, T_POOL, POOL).max(axis=-1)        # (N,64,5)
    flat = pooled.reshape(n, C_OUT * T_POOL)                          # (N,320)
    h = jnp.maximum(flat @ fc1_w.T + fc1_b, 0.0)
    out = h @ fc2_w.T + fc2_b
    return jax.nn.sigmoid(out)


if __name__ == "__main__":
    key = jax.random.PRNGKey(0)
    k = jax.random.split(key, 8)

    # Small, non-multiple-of-tile batch to exercise the grid + padding path.
    batch = 37
    x = jax.random.normal(k[0], (batch, 1, L_IN), jnp.float32)

    # Deterministic synthetic parameters (PyTorch layouts).
    conv_w = 0.1 * jax.random.normal(k[1], (C_OUT, 1, KSIZE), jnp.float32)
    conv_b = 0.1 * jax.random.normal(k[2], (C_OUT,), jnp.float32)
    fc1_w = 0.05 * jax.random.normal(k[3], (HID, C_OUT * T_POOL), jnp.float32)
    fc1_b = 0.05 * jax.random.normal(k[4], (HID,), jnp.float32)
    fc2_w = 0.05 * jax.random.normal(k[5], (1, HID), jnp.float32)
    fc2_b = 0.05 * jax.random.normal(k[6], (1,), jnp.float32)

    out = cnn_forward(x, conv_w, conv_b, fc1_w, fc1_b, fc2_w, fc2_b)
    out = jax.block_until_ready(out)

    ref = ref_forward(x, conv_w, conv_b, fc1_w, fc1_b, fc2_w, fc2_b)
    assert out.shape == (batch, 1), out.shape
    assert jnp.allclose(out, ref, atol=1e-5, rtol=1e-5), (out, ref)

    print("KERNEL_OK")
</pallas_src>

<mosaic_0001>
module attributes {stable_mosaic.version = 11 : i64} {
  func.func @cnn_kernel(%arg0: i32, %arg1: memref<24x12xf32, #tpu.memory_space<vmem>>, %arg2: memref<12x384xf32, #tpu.memory_space<vmem>>, %arg3: memref<12x384xf32, #tpu.memory_space<vmem>>, %arg4: memref<1x384xf32, #tpu.memory_space<vmem>>, %arg5: memref<384x64xf32, #tpu.memory_space<vmem>>, %arg6: memref<1x64xf32, #tpu.memory_space<vmem>>, %arg7: memref<1x64xf32, #tpu.memory_space<vmem>>, %arg8: memref<1x1xf32, #tpu.memory_space<vmem>>, %arg9: memref<24x1xf32, #tpu.memory_space<vmem>>) attributes {dimension_semantics = [#tpu.dimension_semantics<parallel>], iteration_bounds = array<i64: 2>, scalar_prefetch = 0 : i64, scratch_operands = 0 : i64, tpu.core_type = #tpu.core_type<tc>, window_params = [{transform_indices = @transform_0, window_bounds = array<i64: 24, 12>}, {pipeline_mode = #tpu.pipeline_mode<synchronous>, transform_indices = @transform_1, window_bounds = array<i64: 12, 384>}, {pipeline_mode = #tpu.pipeline_mode<synchronous>, transform_indices = @transform_2, window_bounds = array<i64: 12, 384>}, {pipeline_mode = #tpu.pipeline_mode<synchronous>, transform_indices = @transform_3, window_bounds = array<i64: 1, 384>}, {pipeline_mode = #tpu.pipeline_mode<synchronous>, transform_indices = @transform_4, window_bounds = array<i64: 384, 64>}, {pipeline_mode = #tpu.pipeline_mode<synchronous>, transform_indices = @transform_5, window_bounds = array<i64: 1, 64>}, {pipeline_mode = #tpu.pipeline_mode<synchronous>, transform_indices = @transform_6, window_bounds = array<i64: 1, 64>}, {pipeline_mode = #tpu.pipeline_mode<synchronous>, transform_indices = @transform_7, window_bounds = array<i64: 1, 1>}, {transform_indices = @transform_8, window_bounds = array<i64: 24, 1>}]} {
    %c0 = arith.constant 0 : index
    %c0_0 = arith.constant 0 : index
    %0 = vector.load %arg1[%c0, %c0_0] : memref<24x12xf32, #tpu.memory_space<vmem>>, vector<24x12xf32>
    %c0_1 = arith.constant 0 : index
    %c0_2 = arith.constant 0 : index
    %1 = vector.load %arg2[%c0_1, %c0_2] : memref<12x384xf32, #tpu.memory_space<vmem>>, vector<12x384xf32>
    %cst = arith.constant dense<0.000000e+00> : vector<24x384xf32>
    %2 = tpu.matmul %0, %1, %cst {dimension_numbers = #tpu.dot_dimension_numbers<[1], [0], [0], [1], [0, 0, 1, 1], [], []>} : vector<24x12xf32>, vector<12x384xf32>, vector<24x384xf32> -> vector<24x384xf32>
    %c0_3 = arith.constant 0 : index
    %c0_4 = arith.constant 0 : index
    %3 = vector.load %arg3[%c0_3, %c0_4] : memref<12x384xf32, #tpu.memory_space<vmem>>, vector<12x384xf32>
    %cst_5 = arith.constant dense<0.000000e+00> : vector<24x384xf32>
    %4 = tpu.matmul %0, %3, %cst_5 {dimension_numbers = #tpu.dot_dimension_numbers<[1], [0], [0], [1], [0, 0, 1, 1], [], []>} : vector<24x12xf32>, vector<12x384xf32>, vector<24x384xf32> -> vector<24x384xf32>
    %5 = arith.maximumf %2, %4 : vector<24x384xf32>
    %c0_6 = arith.constant 0 : index
    %c0_7 = arith.constant 0 : index
    %6 = vector.load %arg4[%c0_6, %c0_7] : memref<1x384xf32, #tpu.memory_space<vmem>>, vector<1x384xf32>
    %7 = vector.broadcast %6 : vector<1x384xf32> to vector<24x384xf32>
    %8 = arith.addf %5, %7 : vector<24x384xf32>
    %cst_8 = arith.constant 0.000000e+00 : f32
    %9 = vector.broadcast %cst_8 : f32 to vector<24x384xf32>
    %10 = arith.maximumf %8, %9 : vector<24x384xf32>
    %c0_9 = arith.constant 0 : index
    %c0_10 = arith.constant 0 : index
    %11 = vector.load %arg5[%c0_9, %c0_10] : memref<384x64xf32, #tpu.memory_space<vmem>>, vector<384x64xf32>
    %cst_11 = arith.constant dense<0.000000e+00> : vector<24x64xf32>
    %12 = tpu.matmul %10, %11, %cst_11 {dimension_numbers = #tpu.dot_dimension_numbers<[1], [0], [0], [1], [0, 0, 1, 1], [], []>} : vector<24x384xf32>, vector<384x64xf32>, vector<24x64xf32> -> vector<24x64xf32>
    %c0_12 = arith.constant 0 : index
    %c0_13 = arith.constant 0 : index
    %13 = vector.load %arg6[%c0_12, %c0_13] : memref<1x64xf32, #tpu.memory_space<vmem>>, vector<1x64xf32>
    %14 = vector.broadcast %13 : vector<1x64xf32> to vector<24x64xf32>
    %15 = arith.addf %12, %14 : vector<24x64xf32>
    %cst_14 = arith.constant 0.000000e+00 : f32
    %16 = vector.broadcast %cst_14 : f32 to vector<24x64xf32>
    %17 = arith.maximumf %15, %16 : vector<24x64xf32>
    %c0_15 = arith.constant 0 : index
    %c0_16 = arith.constant 0 : index
    %18 = vector.load %arg7[%c0_15, %c0_16] : memref<1x64xf32, #tpu.memory_space<vmem>>, vector<1x64xf32>
    %19 = vector.broadcast %18 : vector<1x64xf32> to vector<24x64xf32>
    %20 = arith.mulf %17, %19 : vector<24x64xf32>
    %cst_17 = arith.constant dense<0.000000e+00> : vector<24xf32>
    %21 = vector.multi_reduction <add>, %20, %cst_17 [1] : vector<24x64xf32> to vector<24xf32>
    %22 = vector.shape_cast %21 : vector<24xf32> to vector<24x1xf32>
    %c0_18 = arith.constant 0 : index
    %c0_19 = arith.constant 0 : index
    %23 = vector.load %arg8[%c0_18, %c0_19] : memref<1x1xf32, #tpu.memory_space<vmem>>, vector<1x1xf32>
    %24 = vector.broadcast %23 : vector<1x1xf32> to vector<24x1xf32>
    %25 = arith.addf %22, %24 : vector<24x1xf32>
    %26 = arith.negf %25 : vector<24x1xf32>
    %27 = math.exp %26 : vector<24x1xf32>
    %cst_20 = arith.constant 1.000000e+00 : f32
    %28 = vector.broadcast %cst_20 : f32 to vector<24x1xf32>
    %29 = arith.addf %28, %27 : vector<24x1xf32>
    %30 = arith.divf %28, %29 : vector<24x1xf32>
    %c0_21 = arith.constant 0 : index
    %c0_22 = arith.constant 0 : index
    %31 = vector.load %arg9[%c0_21, %c0_22] : memref<24x1xf32, #tpu.memory_space<vmem>>, vector<24x1xf32>
    tpu.vector_store %arg9[%c0_21, %c0_22], %30 {strides = array<i32>} : memref<24x1xf32, #tpu.memory_space<vmem>>, vector<24x1xf32>,
    return
  }
  func.func @transform_0(%arg0: i32) -> (i32, i32) {
    %c0_i32 = arith.constant 0 : i32
    %c0_i32_0 = arith.constant 0 : i32
    return %arg0, %c0_i32 : i32, i32
  }
  func.func @transform_1(%arg0: i32) -> (i32, i32) {
    %c0_i32 = arith.constant 0 : i32
    %c0_i32_0 = arith.constant 0 : i32
    %c0_i32_1 = arith.constant 0 : i32
    return %c0_i32, %c0_i32_0 : i32, i32
  }
  func.func @transform_2(%arg0: i32) -> (i32, i32) {
    %c0_i32 = arith.constant 0 : i32
    %c0_i32_0 = arith.constant 0 : i32
    %c0_i32_1 = arith.constant 0 : i32
    return %c0_i32, %c0_i32_0 : i32, i32
  }
  func.func @transform_3(%arg0: i32) -> (i32, i32) {
    %c0_i32 = arith.constant 0 : i32
    %c0_i32_0 = arith.constant 0 : i32
    %c0_i32_1 = arith.constant 0 : i32
    return %c0_i32, %c0_i32_0 : i32, i32
  }
  func.func @transform_4(%arg0: i32) -> (i32, i32) {
    %c0_i32 = arith.constant 0 : i32
    %c0_i32_0 = arith.constant 0 : i32
    %c0_i32_1 = arith.constant 0 : i32
    return %c0_i32, %c0_i32_0 : i32, i32
  }
  func.func @transform_5(%arg0: i32) -> (i32, i32) {
    %c0_i32 = arith.constant 0 : i32
    %c0_i32_0 = arith.constant 0 : i32
    %c0_i32_1 = arith.constant 0 : i32
    return %c0_i32, %c0_i32_0 : i32, i32
  }
  func.func @transform_6(%arg0: i32) -> (i32, i32) {
    %c0_i32 = arith.constant 0 : i32
    %c0_i32_0 = arith.constant 0 : i32
    %c0_i32_1 = arith.constant 0 : i32
    return %c0_i32, %c0_i32_0 : i32, i32
  }
  func.func @transform_7(%arg0: i32) -> (i32, i32) {
    %c0_i32 = arith.constant 0 : i32
    %c0_i32_0 = arith.constant 0 : i32
    %c0_i32_1 = arith.constant 0 : i32
    return %c0_i32, %c0_i32_0 : i32, i32
  }
  func.func @transform_8(%arg0: i32) -> (i32, i32) {
    %c0_i32 = arith.constant 0 : i32
    %c0_i32_0 = arith.constant 0 : i32
    return %arg0, %c0_i32 : i32, i32
  }
}

</mosaic_0001>

<llo_original>
// kernel: tpu_custom_call.1
$region0: #{tpu_custom_call.1}
  #allocation0 [shape = 'u32[]', space=smem, size = 0x4, offset = 0x4, fixed_abs, tag = 'smem constant byte address 0x4 - core index']
  #allocation1 [shape = 'u32[72,128]{1,0:T(1,128)}', space=vmem, size = 0x9000, scoped, tag = 'internal scratch']
  #allocation2 [shape = 'f32[1,1]{1,0:T(1,128)S(1)}', space=vmem, size = 0x200, scoped, tag = 'scoped memory for tpu_custom_call.1']
  %s0 = inlined_call_operand.vmem [shape: f32[48,12], index: 0, kind: input, shape index: {}]
  %s1 = inlined_call_operand.vmem [shape: f32[12,384], index: 1, kind: input, shape index: {}]
  %s2 = inlined_call_operand.vmem [shape: f32[12,384], index: 2, kind: input, shape index: {}]
  %s3 = inlined_call_operand.vmem [shape: f32[1,384], index: 3, kind: input, shape index: {}]
  %s4 = inlined_call_operand.vmem [shape: f32[384,64], index: 4, kind: input, shape index: {}]
  %s5 = inlined_call_operand.vmem [shape: f32[1,64], index: 5, kind: input, shape index: {}]
  %s6 = inlined_call_operand.vmem [shape: f32[1,64], index: 6, kind: input, shape index: {}]
  %s7 = inlined_call_operand.<no memory space> [shape: f32[1,1], index: 7, kind: input, shape index: {}]
  %s8 = inlined_call_operand.vmem [shape: f32[48,1], index: 8, kind: output, shape index: {}]
  %s9 = sld [smem:[#allocation0]]
  $region65: #{tpu_custom_call.1} parent=0
    _
  %s11 = ssub.s32 1, %s9
  %s12 = scalar_select 0, %s11, %s9
  %v13 = vstv %s7
  %14 = vst [vmem:[#allocation2] sm:$0x1] %v13
  loop: start=0, step=1, limit=4
  $region2: #{tpu_custom_call.1} parent=0 // loop_pre_header
    _
  $region3: #{tpu_custom_call.1} parent=0 // loop_header
    %s16 = sphi 0, %s20
    %p17 = scmp.ge.s32.totalorder %s16, 4
    %s26 = sphi 0, %s28
    %s29 = sphi 0, %s26
    %s30 = sphi 0, %s29
    %s46 = sphi 0, %s30
    %s50 = sphi 0, %s50
    %s52 = sphi 0, %s50
    %s53 = sphi 0, %s52
    %s67 = sphi 0, %s53
    %s71 = sphi 0, %s71
    %s73 = sphi 0, %s71
    %s74 = sphi 0, %s73
    %s88 = sphi 0, %s74
    %s92 = sphi 0, %s92
    %s94 = sphi 0, %s92
    %s95 = sphi 0, %s94
    %s109 = sphi 0, %s95
    %s113 = sphi 0, %s113
    %s115 = sphi 0, %s113
    %s116 = sphi 0, %s115
    %s130 = sphi 0, %s116
    %s134 = sphi 0, %s134
    %s136 = sphi 0, %s134
    %s137 = sphi 0, %s136
    %s151 = sphi 0, %s137
    %s155 = sphi 0, %s155
    %s157 = sphi 0, %s155
    %s158 = sphi 0, %s157
    %s172 = sphi 0, %s158
    %s176 = sphi 0, %s176
    %s178 = sphi 0, %s176
    %s179 = sphi 0, %s178
    %s193 = sphi 0, %s179
    %s199 = sphi 0, %s201
    %s202 = sphi 0, %s199
    %s203 = sphi 0, %s202
    %s219 = sphi 0, %s203
  $region4: #{tpu_custom_call.1} parent=0 // loop_header_branch
    %19 = sbr.rel (%p17) target = $region8
  $region5: #{tpu_custom_call.1} parent=0 // loop_body
    %s21 = ssub.s32 %s16, 1
    %s22 = ssub.s32 %s16, 2
    %s23 = sadd.s32 %s16, 1
    %s24 = ssub.s32 %s16, %s23
    %p25 = scmp.eq.s32.totalorder %s24, 0
    %s27 = sadd.s32 %s26, 1
    %s28 = scalar_select %p25, %s26, %s27
    %p31 = pneg %p25
    %p32 = scmp.eq.s32.totalorder %s16, 1
    %p33 = por %p31, %p32
    %p34 = scmp.ne.s32.totalorder %s26, %s29
    %p35 = scmp.eq.s32.totalorder %s16, 0
    %p36 = por %p34, %p35
    %p37 = scmp.ne.s32.totalorder %s26, %s29
    %p38 = scmp.eq.s32.totalorder %s21, 1
    %p39 = por %p37, %p38
    %p40 = scmp.ne.s32.totalorder %s29, %s30
    %p41 = scmp.eq.s32.totalorder %s21, 0
    %p42 = por %p40, %p41
    %p43 = scmp.ne.s32.totalorder %s29, %s30
    %p44 = scmp.eq.s32.totalorder %s22, 1
    %p45 = por %p43, %p44
    %p47 = scmp.ne.s32.totalorder %s30, %s46
    %p48 = scmp.eq.s32.totalorder %s22, 0
    %p49 = por %p47, %p48
    %s51 = sadd.s32 %s50, 1
    %p54 = scmp.eq.s32.totalorder %s16, 1
    %p55 = scmp.ne.s32.totalorder %s50, %s52
    %p56 = scmp.eq.s32.totalorder %s16, 0
    %p57 = por %p55, %p56
    %p58 = scmp.ne.s32.totalorder %s50, %s52
    %p59 = scmp.eq.s32.totalorder %s21, 1
    %p60 = por %p58, %p59
    %p61 = scmp.ne.s32.totalorder %s52, %s53
    %p62 = scmp.eq.s32.totalorder %s21, 0
    %p63 = por %p61, %p62
    %p64 = scmp.ne.s32.totalorder %s52, %s53
    %p65 = scmp.eq.s32.totalorder %s22, 1
    %p66 = por %p64, %p65
    %p68 = scmp.ne.s32.totalorder %s53, %s67
    %p69 = scmp.eq.s32.totalorder %s22, 0
    %p70 = por %p68, %p69
    %s72 = sadd.s32 %s71, 1
    %p75 = scmp.eq.s32.totalorder %s16, 1
    %p76 = scmp.ne.s32.totalorder %s71, %s73
    %p77 = scmp.eq.s32.totalorder %s16, 0
    %p78 = por %p76, %p77
    %p79 = scmp.ne.s32.totalorder %s71, %s73
    %p80 = scmp.eq.s32.totalorder %s21, 1
    %p81 = por %p79, %p80
    %p82 = scmp.ne.s32.totalorder %s73, %s74
    %p83 = scmp.eq.s32.totalorder %s21, 0
    %p84 = por %p82, %p83
    %p85 = scmp.ne.s32.totalorder %s73, %s74
    %p86 = scmp.eq.s32.totalorder %s22, 1
    %p87 = por %p85, %p86
    %p89 = scmp.ne.s32.totalorder %s74, %s88
    %p90 = scmp.eq.s32.totalorder %s22, 0
    %p91 = por %p89, %p90
    %s93 = sadd.s32 %s92, 1
    %p96 = scmp.eq.s32.totalorder %s16, 1
    %p97 = scmp.ne.s32.totalorder %s92, %s94
    %p98 = scmp.eq.s32.totalorder %s16, 0
    %p99 = por %p97, %p98
    %p100 = scmp.ne.s32.totalorder %s92, %s94
    %p101 = scmp.eq.s32.totalorder %s21, 1
    %p102 = por %p100, %p101
    %p103 = scmp.ne.s32.totalorder %s94, %s95
    %p104 = scmp.eq.s32.totalorder %s21, 0
    %p105 = por %p103, %p104
    %p106 = scmp.ne.s32.totalorder %s94, %s95
    %p107 = scmp.eq.s32.totalorder %s22, 1
    %p108 = por %p106, %p107
    %p110 = scmp.ne.s32.totalorder %s95, %s109
    %p111 = scmp.eq.s32.totalorder %s22, 0
    %p112 = por %p110, %p111
    %s114 = sadd.s32 %s113, 1
    %p117 = scmp.eq.s32.totalorder %s16, 1
    %p118 = scmp.ne.s32.totalorder %s113, %s115
    %p119 = scmp.eq.s32.totalorder %s16, 0
    %p120 = por %p118, %p119
    %p121 = scmp.ne.s32.totalorder %s113, %s115
    %p122 = scmp.eq.s32.totalorder %s21, 1
    %p123 = por %p121, %p122
    %p124 = scmp.ne.s32.totalorder %s115, %s116
    %p125 = scmp.eq.s32.totalorder %s21, 0
    %p126 = por %p124, %p125
    %p127 = scmp.ne.s32.totalorder %s115, %s116
    %p128 = scmp.eq.s32.totalorder %s22, 1
    %p129 = por %p127, %p128
    %p131 = scmp.ne.s32.totalorder %s116, %s130
    %p132 = scmp.eq.s32.totalorder %s22, 0
    %p133 = por %p131, %p132
    %s135 = sadd.s32 %s134, 1
    %p138 = scmp.eq.s32.totalorder %s16, 1
    %p139 = scmp.ne.s32.totalorder %s134, %s136
    %p140 = scmp.eq.s32.totalorder %s16, 0
    %p141 = por %p139, %p140
    %p142 = scmp.ne.s32.totalorder %s134, %s136
    %p143 = scmp.eq.s32.totalorder %s21, 1
    %p144 = por %p142, %p143
    %p145 = scmp.ne.s32.totalorder %s136, %s137
    %p146 = scmp.eq.s32.totalorder %s21, 0
    %p147 = por %p145, %p146
    %p148 = scmp.ne.s32.totalorder %s136, %s137
    %p149 = scmp.eq.s32.totalorder %s22, 1
    %p150 = por %p148, %p149
    %p152 = scmp.ne.s32.totalorder %s137, %s151
    %p153 = scmp.eq.s32.totalorder %s22, 0
    %p154 = por %p152, %p153
    %s156 = sadd.s32 %s155, 1
    %p159 = scmp.eq.s32.totalorder %s16, 1
    %p160 = scmp.ne.s32.totalorder %s155, %s157
    %p161 = scmp.eq.s32.totalorder %s16, 0
    %p162 = por %p160, %p161
    %p163 = scmp.ne.s32.totalorder %s155, %s157
    %p164 = scmp.eq.s32.totalorder %s21, 1
    %p165 = por %p163, %p164
    %p166 = scmp.ne.s32.totalorder %s157, %s158
    %p167 = scmp.eq.s32.totalorder %s21, 0
    %p168 = por %p166, %p167
    %p169 = scmp.ne.s32.totalorder %s157, %s158
    %p170 = scmp.eq.s32.totalorder %s22, 1
    %p171 = por %p169, %p170
    %p173 = scmp.ne.s32.totalorder %s158, %s172
    %p174 = scmp.eq.s32.totalorder %s22, 0
    %p175 = por %p173, %p174
    %s177 = sadd.s32 %s176, 1
    %p180 = scmp.eq.s32.totalorder %s16, 1
    %p181 = scmp.ne.s32.totalorder %s176, %s178
    %p182 = scmp.eq.s32.totalorder %s16, 0
    %p183 = por %p181, %p182
    %p184 = scmp.ne.s32.totalorder %s176, %s178
    %p185 = scmp.eq.s32.totalorder %s21, 1
    %p186 = por %p184, %p185
    %p187 = scmp.ne.s32.totalorder %s178, %s179
    %p188 = scmp.eq.s32.totalorder %s21, 0
    %p189 = por %p187, %p188
    %p190 = scmp.ne.s32.totalorder %s178, %s179
    %p191 = scmp.eq.s32.totalorder %s22, 1
    %p192 = por %p190, %p191
    %p194 = scmp.ne.s32.totalorder %s179, %s193
    %p195 = scmp.eq.s32.totalorder %s22, 0
    %p196 = por %p194, %p195
    %s197 = ssub.s32 %s16, %s23
    %p198 = scmp.eq.s32.totalorder %s197, 0
    %s200 = sadd.s32 %s199, 1
    %s201 = scalar_select %p198, %s199, %s200
    %p204 = pneg %p198
    %p205 = scmp.eq.s32.totalorder %s16, 1
    %p206 = por %p204, %p205
    %p207 = scmp.ne.s32.totalorder %s199, %s202
    %p208 = scmp.eq.s32.totalorder %s16, 0
    %p209 = por %p207, %p208
    %p210 = scmp.ne.s32.totalorder %s199, %s202
    %p211 = scmp.eq.s32.totalorder %s21, 1
    %p212 = por %p210, %p211
    %p213 = scmp.ne.s32.totalorder %s202, %s203
    %p214 = scmp.eq.s32.totalorder %s21, 0
    %p215 = por %p213, %p214
    %p216 = scmp.ne.s32.totalorder %s202, %s203
    %p217 = scmp.eq.s32.totalorder %s22, 1
    %p218 = por %p216, %p217
    %p220 = scmp.ne.s32.totalorder %s203, %s219
    %p221 = scmp.eq.s32.totalorder %s22, 0
    %p222 = por %p220, %p221
    %p223 = scmp.le.s32.totalorder 1, %s16
    %p224 = scmp.lt.s32.totalorder %s16, 3
    %p225 = pnand %p223, %p224
    %p226 = pneg %p225
    // Predicated region
    $region9: #{tpu_custom_call.1} parent=5 // pred_check
      _
    $region10: #{tpu_custom_call.1} parent=5 // pred_check_branch
      %228 = sbr.rel (%p225) target = $region12
    $region11: #{tpu_custom_call.1} parent=5 // pred_region
      %s229 = ssub.s32 %s16, 1
      // Predicated region
      $region13: #{tpu_custom_call.1} parent=11 // pred_check
        %p230 = pneg %p63
      $region14: #{tpu_custom_call.1} parent=11 // pred_check_branch
        %232 = sbr.rel (%p230) target = $region16
      $region15: #{tpu_custom_call.1} parent=11 // pred_region
        _
      $region16: #{tpu_custom_call.1} parent=11 // pred_fallthru
        _
      // Predicated region
      $region17: #{tpu_custom_call.1} parent=11 // pred_check
        %p233 = pneg %p84
      $region18: #{tpu_custom_call.1} parent=11 // pred_check_branch
        %235 = sbr.rel (%p233) target = $region20
      $region19: #{tpu_custom_call.1} parent=11 // pred_region
        _
      $region20: #{tpu_custom_call.1} parent=11 // pred_fallthru
        _
      // Predicated region
      $region21: #{tpu_custom_call.1} parent=11 // pred_check
        %p236 = pneg %p105
      $region22: #{tpu_custom_call.1} parent=11 // pred_check_branch
        %238 = sbr.rel (%p236) target = $region24
      $region23: #{tpu_custom_call.1} parent=11 // pred_region
        _
      $region24: #{tpu_custom_call.1} parent=11 // pred_fallthru
        _
      // Predicated region
      $region25: #{tpu_custom_call.1} parent=11 // pred_check
        %p239 = pneg %p126
      $region26: #{tpu_custom_call.1} parent=11 // pred_check_branch
        %241 = sbr.rel (%p239) target = $region28
      $region27: #{tpu_custom_call.1} parent=11 // pred_region
        _
      $region28: #{tpu_custom_call.1} parent=11 // pred_fallthru
        _
      // Predicated region
      $region29: #{tpu_custom_call.1} parent=11 // pred_check
        %p242 = pneg %p147
      $region30: #{tpu_custom_call.1} parent=11 // pred_check_branch
        %244 = sbr.rel (%p242) target = $region32
      $region31: #{tpu_custom_call.1} parent=11 // pred_region
        _
      $region32: #{tpu_custom_call.1} parent=11 // pred_fallthru
        _
      // Predicated region
      $region33: #{tpu_custom_call.1} parent=11 // pred_check
        %p245 = pneg %p168
      $region34: #{tpu_custom_call.1} parent=11 // pred_check_branch
        %247 = sbr.rel (%p245) target = $region36
      $region35: #{tpu_custom_call.1} parent=11 // pred_region
        _
      $region36: #{tpu_custom_call.1} parent=11 // pred_fallthru
        _
      // Predicated region
      $region37: #{tpu_custom_call.1} parent=11 // pred_check
        %p248 = pneg %p189
      $region38: #{tpu_custom_call.1} parent=11 // pred_check_branch
        %250 = sbr.rel (%p248) target = $region40
      $region39: #{tpu_custom_call.1} parent=11 // pred_region
        _
      $region40: #{tpu_custom_call.1} parent=11 // pred_fallthru
        _
    $region12: #{tpu_custom_call.1} parent=5 // pred_fallthru
      _
    %p251 = scmp.lt.s32.totalorder %s16, 2
    // Predicated region
    $region41: #{tpu_custom_call.1} parent=5 // pred_check
      %p252 = pneg %p251
    $region42: #{tpu_custom_call.1} parent=5 // pred_check_branch
      %254 = sbr.rel (%p252) target = $region44
    $region43: #{tpu_custom_call.1} parent=5 // pred_region
      // Predicated region
      $region45: #{tpu_custom_call.1} parent=43 // pred_check
        %p255 = pneg %p36
      $region46: #{tpu_custom_call.1} parent=43 // pred_check_branch
        %257 = sbr.rel (%p255) target = $region48
      $region47: #{tpu_custom_call.1} parent=43 // pred_region
        %s258 = smul.u32 3, %s16
        %p259 = scmp.lt.s32.totalorder %s258, 5
        %s260 = scalar_select %p259, %s258, 5
        %s261 = smul.addr %s260, 8
        %s262 = scalar_lea.vmem %s0, %s261
        %s263 = smul.u32 3, %s16
      $region48: #{tpu_custom_call.1} parent=43 // pred_fallthru
        _
    $region44: #{tpu_custom_call.1} parent=5 // pred_fallthru
      _
    %p264 = scmp.le.s32.totalorder 1, %s16
    %p265 = scmp.lt.s32.totalorder %s16, 3
    %p266 = pnand %p264, %p265
    %p267 = pneg %p266
    // Predicated region
    $region49: #{tpu_custom_call.1} parent=5 // pred_check
      _
    $region50: #{tpu_custom_call.1} parent=5 // pred_check_branch
      %269 = sbr.rel (%p266) target = $region52
    $region51: #{tpu_custom_call.1} parent=5 // pred_region
      %s270 = ssub.s32 %s16, 1
      %s271 = smul.u32 3, %s21
      %p272 = scmp.lt.s32.totalorder %s271, 5
      %s273 = scalar_select %p272, %s271, 5
      %s274 = smul.addr %s273, 8
      %s275 = scalar_lea.vmem %s0, %s274
      %p276 = pneg %p42
      %p277 = pneg %p39
      %p278 = pneg %p63
      %p279 = pneg %p60
      %p280 = pneg %p84
      %p281 = pneg %p81
      %p282 = pneg %p105
      %p283 = pneg %p102
      %p284 = pneg %p126
      %p285 = pneg %p123
      %p286 = pneg %p147
      %p287 = pneg %p144
      %p288 = pneg %p168
      %p289 = pneg %p165
      %p290 = pneg %p189
      %p291 = pneg %p186
      %p292 = pneg %p215
      %p293 = pneg %p212
      %s294 = smul.u32 3, %s21
      %p295 = scmp.lt.s32.totalorder %s294, 5
      %s296 = scalar_select %p295, %s294, 5
      %s297 = smul.addr %s296, 8
      %s298 = scalar_lea.vmem %s8, %s297
      %s299 = smul.u32 3, %s21
      %p300 = scmp.lt.s32.totalorder %s299, 5
      %s301 = scalar_select %p300, %s299, 5
      %s302 = smul.addr %s301, 8
      %s303 = scalar_lea.vmem %s0, %s302
      %s304 = smul.u32 3, %s21
      %s305 = smul.u32 3, %s21
      %p306 = scmp.lt.s32.totalorder %s305, 5
      %s307 = scalar_select %p306, %s305, 5
      %s308 = smul.addr %s307, 8
      %s309 = scalar_lea.vmem %s8, %s308
      %s310 = smul.u32 3, %s21
      %v311 = vld [vmem:[%s303] sm:$0xff]
      %v312 = vld [vmem:[%s303 + $0x8] sm:$0xff]
      %v313 = vld [vmem:[%s303 + $0x10] sm:$0xff]
      %v314 = vld [vmem:[%s1] sm:$0xff]
      %v315 = vld [vmem:[%s1 + $0x8] sm:$0xff]
      %v316 = vld [vmem:[%s1 + $0x10] sm:$0xff]
      %v317 = vld [vmem:[%s1 + $0x18] sm:$0xf]
      %v318 = vld [vmem:[%s1 + $0x20] sm:$0xf]
      %v319 = vld [vmem:[%s1 + $0x28] sm:$0xf]
      %vm320 = vcmask 97280
      %v322 = vsel %vm320, %v311, 0
      %v325 = vsel %vm320, %v312, 0
      %v328 = vsel %vm320, %v313, 0
      %vm330 = vcmask 1043456
      %v332 = vsel %vm330, %v317, 0
      %v335 = vsel %vm330, %v318, 0
      %v338 = vsel %vm330, %v319, 0
      %340 = vmatpush.msra.mxu0 0.0
      %341 = vmatpush.msra.mxu0 0.0
      %342 = vmatpush.msra.mxu0 0.0
      %343 = vmatpush.msra.mxu0 0.0
      %344 = vmatpush.msra.mxu0 0.0
      %345 = vmatpush.msra.mxu0 0.0
      %346 = vmatpush.msra.mxu0 0.0
      %347 = vmatpush.msra.mxu0 0.0
      %348 = vmatpush.msra.mxu0 0.0
      %349 = vmatpush.msra.mxu0 0.0
      %350 = vmatpush.msra.mxu0 0.0
      %351 = vmatpush.msra.mxu0 0.0
      %352 = vmatpush.msra.mxu0 0.0
      %353 = vmatpush.msra.mxu0 0.0
      %354 = vmatpush.msra.mxu0 %v332
      %355 = vmatpush.msra.mxu0 %v314
      %356 = vmatmul.f32.gmra.mxu0 %v322
      %v357 = vpop.f32.mrf.mxu0
      %v358 = vadd.f32 0.0, %v357
      %359 = vmatmul.f32.gmra.mxu0 %v325
      %v360 = vpop.f32.mrf.mxu0
      %v361 = vadd.f32 0.0, %v360
      %362 = vmatmul.f32.gmra.mxu0 %v328
      %v363 = vpop.f32.mrf.mxu0
      %v364 = vadd.f32 0.0, %v363
      %365 = vdwg.mxu0
      %366 = vmatpush.msra.mxu0 0.0
      %367 = vmatpush.msra.mxu0 0.0
      %368 = vmatpush.msra.mxu0 0.0
      %369 = vmatpush.msra.mxu0 0.0
      %370 = vmatpush.msra.mxu0 0.0
      %371 = vmatpush.msra.mxu0 0.0
      %372 = vmatpush.msra.mxu0 0.0
      %373 = vmatpush.msra.mxu0 0.0
      %374 = vmatpush.msra.mxu0 0.0
      %375 = vmatpush.msra.mxu0 0.0
      %376 = vmatpush.msra.mxu0 0.0
      %377 = vmatpush.msra.mxu0 0.0
      %378 = vmatpush.msra.mxu0 0.0
      %379 = vmatpush.msra.mxu0 0.0
      %380 = vmatpush.msra.mxu0 %v335
      %381 = vmatpush.msra.mxu0 %v315
      %382 = vmatmul.f32.gmra.mxu0 %v322
      %v383 = vpop.f32.mrf.mxu0
      %v384 = vadd.f32 0.0, %v383
      %385 = vmatmul.f32.gmra.mxu0 %v325
      %v386 = vpop.f32.mrf.mxu0
      %v387 = vadd.f32 0.0, %v386
      %388 = vmatmul.f32.gmra.mxu0 %v328
      %v389 = vpop.f32.mrf.mxu0
      %v390 = vadd.f32 0.0, %v389
      %391 = vdwg.mxu0
      %392 = vmatpush.msra.mxu0 0.0
      %393 = vmatpush.msra.mxu0 0.0
      %394 = vmatpush.msra.mxu0 0.0
      %395 = vmatpush.msra.mxu0 0.0
      %396 = vmatpush.msra.mxu0 0.0
      %397 = vmatpush.msra.mxu0 0.0
      %398 = vmatpush.msra.mxu0 0.0
      %399 = vmatpush.msra.mxu0 0.0
      %400 = vmatpush.msra.mxu0 0.0
      %401 = vmatpush.msra.mxu0 0.0
      %402 = vmatpush.msra.mxu0 0.0
      %403 = vmatpush.msra.mxu0 0.0
      %404 = vmatpush.msra.mxu0 0.0
      %405 = vmatpush.msra.mxu0 0.0
      %406 = vmatpush.msra.mxu0 %v338
      %407 = vmatpush.msra.mxu0 %v316
      %408 = vmatmul.f32.gmra.mxu0 %v322
      %v409 = vpop.f32.mrf.mxu0
      %v410 = vadd.f32 0.0, %v409
      %411 = vmatmul.f32.gmra.mxu0 %v325
      %v412 = vpop.f32.mrf.mxu0
      %v413 = vadd.f32 0.0, %v412
      %414 = vmatmul.f32.gmra.mxu0 %v328
      %v415 = vpop.f32.mrf.mxu0
      %v416 = vadd.f32 0.0, %v415
      %417 = vdwg.mxu0
      %v418 = vld [vmem:[%s2] sm:$0xff]
      %v419 = vld [vmem:[%s2 + $0x8] sm:$0xff]
      %v420 = vld [vmem:[%s2 + $0x10] sm:$0xff]
      %v421 = vld [vmem:[%s2 + $0x18] sm:$0xf]
      %v422 = vld [vmem:[%s2 + $0x20] sm:$0xf]
      %v423 = vld [vmem:[%s2 + $0x28] sm:$0xf]
      %v425 = vsel %vm330, %v421, 0
      %v428 = vsel %vm330, %v422, 0
      %v431 = vsel %vm330, %v423, 0
      %433 = vmatpush.msra.mxu0 0.0
      %434 = vmatpush.msra.mxu0 0.0
      %435 = vmatpush.msra.mxu0 0.0
      %436 = vmatpush.msra.mxu0 0.0
      %437 = vmatpush.msra.mxu0 0.0
      %438 = vmatpush.msra.mxu0 0.0
      %439 = vmatpush.msra.mxu0 0.0
      %440 = vmatpush.msra.mxu0 0.0
      %441 = vmatpush.msra.mxu0 0.0
      %442 = vmatpush.msra.mxu0 0.0
      %443 = vmatpush.msra.mxu0 0.0
      %444 = vmatpush.msra.mxu0 0.0
      %445 = vmatpush.msra.mxu0 0.0
      %446 = vmatpush.msra.mxu0 0.0
      %447 = vmatpush.msra.mxu0 %v425
      %448 = vmatpush.msra.mxu0 %v418
      %449 = vmatmul.f32.gmra.mxu0 %v322
      %v450 = vpop.f32.mrf.mxu0
      %v451 = vadd.f32 0.0, %v450
      %452 = vmatmul.f32.gmra.mxu0 %v325
      %v453 = vpop.f32.mrf.mxu0
      %v454 = vadd.f32 0.0, %v453
      %455 = vmatmul.f32.gmra.mxu0 %v328
      %v456 = vpop.f32.mrf.mxu0
      %v457 = vadd.f32 0.0, %v456
      %458 = vdwg.mxu0
      %459 = vmatpush.msra.mxu0 0.0
      %460 = vmatpush.msra.mxu0 0.0
      %461 = vmatpush.msra.mxu0 0.0
      %462 = vmatpush.msra.mxu0 0.0
      %463 = vmatpush.msra.mxu0 0.0
      %464 = vmatpush.msra.mxu0 0.0
      %465 = vmatpush.msra.mxu0 0.0
      %466 = vmatpush.msra.mxu0 0.0
      %467 = vmatpush.msra.mxu0 0.0
      %468 = vmatpush.msra.mxu0 0.0
      %469 = vmatpush.msra.mxu0 0.0
      %470 = vmatpush.msra.mxu0 0.0
      %471 = vmatpush.msra.mxu0 0.0
      %472 = vmatpush.msra.mxu0 0.0
      %473 = vmatpush.msra.mxu0 %v428
      %474 = vmatpush.msra.mxu0 %v419
      %475 = vmatmul.f32.gmra.mxu0 %v322
      %v476 = vpop.f32.mrf.mxu0
      %v477 = vadd.f32 0.0, %v476
      %478 = vmatmul.f32.gmra.mxu0 %v325
      %v479 = vpop.f32.mrf.mxu0
      %v480 = vadd.f32 0.0, %v479
      %481 = vmatmul.f32.gmra.mxu0 %v328
      %v482 = vpop.f32.mrf.mxu0
      %v483 = vadd.f32 0.0, %v482
      %484 = vdwg.mxu0
      %485 = vmatpush.msra.mxu0 0.0
      %486 = vmatpush.msra.mxu0 0.0
      %487 = vmatpush.msra.mxu0 0.0
      %488 = vmatpush.msra.mxu0 0.0
      %489 = vmatpush.msra.mxu0 0.0
      %490 = vmatpush.msra.mxu0 0.0
      %491 = vmatpush.msra.mxu0 0.0
      %492 = vmatpush.msra.mxu0 0.0
      %493 = vmatpush.msra.mxu0 0.0
      %494 = vmatpush.msra.mxu0 0.0
      %495 = vmatpush.msra.mxu0 0.0
      %496 = vmatpush.msra.mxu0 0.0
      %497 = vmatpush.msra.mxu0 0.0
      %498 = vmatpush.msra.mxu0 0.0
      %499 = vmatpush.msra.mxu0 %v431
      %500 = vmatpush.msra.mxu0 %v420
      %501 = vmatmul.f32.gmra.mxu0 %v322
      %v502 = vpop.f32.mrf.mxu0
      %v503 = vadd.f32 0.0, %v502
      %504 = vmatmul.f32.gmra.mxu0 %v325
      %v505 = vpop.f32.mrf.mxu0
      %v506 = vadd.f32 0.0, %v505
      %507 = vmatmul.f32.gmra.mxu0 %v328
      %v508 = vpop.f32.mrf.mxu0
      %v509 = vadd.f32 0.0, %v508
      %510 = vdwg.mxu0
      %v511 = vmax.f32 %v358, %v451
      %v512 = vmax.f32 %v384, %v477
      %v513 = vmax.f32 %v410, %v503
      %v514 = vmax.f32 %v361, %v454
      %v515 = vmax.f32 %v387, %v480
      %v516 = vmax.f32 %v413, %v506
      %v517 = vmax.f32 %v364, %v457
      %v518 = vmax.f32 %v390, %v483
      %v519 = vmax.f32 %v416, %v509
      %v520 = vld [vmem:[%s3] sm:$0x7]
      %v522 = vperm.slane %v520, 0
      %v523 = vperm.slane %v520, 1
      %v524 = vperm.slane %v520, 2
      %v528 = vadd.f32 %v511, %v522
      %v529 = vadd.f32 %v512, %v523
      %v530 = vadd.f32 %v513, %v524
      %v531 = vadd.f32 %v514, %v522
      %v532 = vadd.f32 %v515, %v523
      %v533 = vadd.f32 %v516, %v524
      %v534 = vadd.f32 %v517, %v522
      %v535 = vadd.f32 %v518, %v523
      %v536 = vadd.f32 %v519, %v524
      %v537 = vmax.f32 %v528, 0.0
      %v538 = vmax.f32 %v529, 0.0
      %v539 = vmax.f32 %v530, 0.0
      %v540 = vmax.f32 %v531, 0.0
      %v541 = vmax.f32 %v532, 0.0
      %v542 = vmax.f32 %v533, 0.0
      %v543 = vmax.f32 %v534, 0.0
      %v544 = vmax.f32 %v535, 0.0
      %v545 = vmax.f32 %v536, 0.0
      %v546 = vld [vmem:[%s4] sm:$0xff]
      %v547 = vld [vmem:[%s4 + $0x8] sm:$0xff]
      %v548 = vld [vmem:[%s4 + $0x10] sm:$0xff]
      %v549 = vld [vmem:[%s4 + $0x18] sm:$0xff]
      %v550 = vld [vmem:[%s4 + $0x20] sm:$0xff]
      %v551 = vld [vmem:[%s4 + $0x28] sm:$0xff]
      %v552 = vld [vmem:[%s4 + $0x30] sm:$0xff]
      %v553 = vld [vmem:[%s4 + $0x38] sm:$0xff]
      %v554 = vld [vmem:[%s4 + $0x40] sm:$0xff]
      %v555 = vld [vmem:[%s4 + $0x48] sm:$0xff]
      %v556 = vld [vmem:[%s4 + $0x50] sm:$0xff]
      %v557 = vld [vmem:[%s4 + $0x58] sm:$0xff]
      %v558 = vld [vmem:[%s4 + $0x60] sm:$0xff]
      %v559 = vld [vmem:[%s4 + $0x68] sm:$0xff]
      %v560 = vld [vmem:[%s4 + $0x70] sm:$0xff]
      %v561 = vld [vmem:[%s4 + $0x78] sm:$0xff]
      %v562 = vld [vmem:[%s4 + $0x80] sm:$0xff]
      %v563 = vld [vmem:[%s4 + $0x88] sm:$0xff]
      %v564 = vld [vmem:[%s4 + $0x90] sm:$0xff]
      %v565 = vld [vmem:[%s4 + $0x98] sm:$0xff]
      %v566 = vld [vmem:[%s4 + $0xa0] sm:$0xff]
      %v567 = vld [vmem:[%s4 + $0xa8] sm:$0xff]
      %v568 = vld [vmem:[%s4 + $0xb0] sm:$0xff]
      %v569 = vld [vmem:[%s4 + $0xb8] sm:$0xff]
      %v570 = vld [vmem:[%s4 + $0xc0] sm:$0xff]
      %v571 = vld [vmem:[%s4 + $0xc8] sm:$0xff]
      %v572 = vld [vmem:[%s4 + $0xd0] sm:$0xff]
      %v573 = vld [vmem:[%s4 + $0xd8] sm:$0xff]
      %v574 = vld [vmem:[%s4 + $0xe0] sm:$0xff]
      %v575 = vld [vmem:[%s4 + $0xe8] sm:$0xff]
      %v576 = vld [vmem:[%s4 + $0xf0] sm:$0xff]
      %v577 = vld [vmem:[%s4 + $0xf8] sm:$0xff]
      %v578 = vld [vmem:[%s4 + $0x100] sm:$0xff]
      %v579 = vld [vmem:[%s4 + $0x108] sm:$0xff]
      %v580 = vld [vmem:[%s4 + $0x110] sm:$0xff]
      %v581 = vld [vmem:[%s4 + $0x118] sm:$0xff]
      %v582 = vld [vmem:[%s4 + $0x120] sm:$0xff]
      %v583 = vld [vmem:[%s4 + $0x128] sm:$0xff]
      %v584 = vld [vmem:[%s4 + $0x130] sm:$0xff]
      %v585 = vld [vmem:[%s4 + $0x138] sm:$0xff]
      %v586 = vld [vmem:[%s4 + $0x140] sm:$0xff]
      %v587 = vld [vmem:[%s4 + $0x148] sm:$0xff]
      %v588 = vld [vmem:[%s4 + $0x150] sm:$0xff]
      %v589 = vld [vmem:[%s4 + $0x158] sm:$0xff]
      %v590 = vld [vmem:[%s4 + $0x160] sm:$0xff]
      %v591 = vld [vmem:[%s4 + $0x168] sm:$0xff]
      %v592 = vld [vmem:[%s4 + $0x170] sm:$0xff]
      %v593 = vld [vmem:[%s4 + $0x178] sm:$0xff]
      %v594 = vld [vmem:[%s5] sm:$0x1]
      %v596 = vperm.slane %v594, 0
      %598 = vmatpush.msra.mxu0 %v561
      %599 = vmatpush.msra.mxu0 %v560
      %600 = vmatpush.msra.mxu0 %v559
      %601 = vmatpush.msra.mxu0 %v558
      %602 = vmatpush.msra.mxu0 %v557
      %603 = vmatpush.msra.mxu0 %v556
      %604 = vmatpush.msra.mxu0 %v555
      %605 = vmatpush.msra.mxu0 %v554
      %606 = vmatpush.msra.mxu0 %v553
      %607 = vmatpush.msra.mxu0 %v552
      %608 = vmatpush.msra.mxu0 %v551
      %609 = vmatpush.msra.mxu0 %v550
      %610 = vmatpush.msra.mxu0 %v549
      %611 = vmatpush.msra.mxu0 %v548
      %612 = vmatpush.msra.mxu0 %v547
      %613 = vmatpush.msra.mxu0 %v546
      %614 = vmatmul.f32.gmra.mxu0 %v537
      %v615 = vpop.f32.mrf.mxu0
      %v616 = vadd.f32 %v596, %v615
      %617 = vmatmul.f32.gmra.mxu0 %v540
      %v618 = vpop.f32.mrf.mxu0
      %v619 = vadd.f32 %v596, %v618
      %620 = vmatmul.f32.gmra.mxu0 %v543
      %v621 = vpop.f32.mrf.mxu0
      %v622 = vadd.f32 %v596, %v621
      %623 = vdwg.mxu0
      %624 = vmatpush.msra.mxu0 %v577
      %625 = vmatpush.msra.mxu0 %v576
      %626 = vmatpush.msra.mxu0 %v575
      %627 = vmatpush.msra.mxu0 %v574
      %628 = vmatpush.msra.mxu0 %v573
      %629 = vmatpush.msra.mxu0 %v572
      %630 = vmatpush.msra.mxu0 %v571
      %631 = vmatpush.msra.mxu0 %v570
      %632 = vmatpush.msra.mxu0 %v569
      %633 = vmatpush.msra.mxu0 %v568
      %634 = vmatpush.msra.mxu0 %v567
      %635 = vmatpush.msra.mxu0 %v566
      %636 = vmatpush.msra.mxu0 %v565
      %637 = vmatpush.msra.mxu0 %v564
      %638 = vmatpush.msra.mxu0 %v563
      %639 = vmatpush.msra.mxu0 %v562
      %640 = vmatmul.f32.gmra.mxu0 %v538
      %v641 = vpop.f32.mrf.mxu0
      %v642 = vadd.f32 %v616, %v641
      %643 = vmatmul.f32.gmra.mxu0 %v541
      %v644 = vpop.f32.mrf.mxu0
      %v645 = vadd.f32 %v619, %v644
      %646 = vmatmul.f32.gmra.mxu0 %v544
      %v647 = vpop.f32.mrf.mxu0
      %v648 = vadd.f32 %v622, %v647
      %649 = vdwg.mxu0
      %650 = vmatpush.msra.mxu0 %v593
      %651 = vmatpush.msra.mxu0 %v592
      %652 = vmatpush.msra.mxu0 %v591
      %653 = vmatpush.msra.mxu0 %v590
      %654 = vmatpush.msra.mxu0 %v589
      %655 = vmatpush.msra.mxu0 %v588
      %656 = vmatpush.msra.mxu0 %v587
      %657 = vmatpush.msra.mxu0 %v586
      %658 = vmatpush.msra.mxu0 %v585
      %659 = vmatpush.msra.mxu0 %v584
      %660 = vmatpush.msra.mxu0 %v583
      %661 = vmatpush.msra.mxu0 %v582
      %662 = vmatpush.msra.mxu0 %v581
      %663 = vmatpush.msra.mxu0 %v580
      %664 = vmatpush.msra.mxu0 %v579
      %665 = vmatpush.msra.mxu0 %v578
      %666 = vmatmul.f32.gmra.mxu0 %v539
      %v667 = vpop.f32.mrf.mxu0
      %v668 = vadd.f32 %v642, %v667
      %669 = vmatmul.f32.gmra.mxu0 %v542
      %v670 = vpop.f32.mrf.mxu0
      %v671 = vadd.f32 %v645, %v670
      %672 = vmatmul.f32.gmra.mxu0 %v545
      %v673 = vpop.f32.mrf.mxu0
      %v674 = vadd.f32 %v648, %v673
      %675 = vdwg.mxu0
      %v676 = vmax.f32 %v668, 0.0
      %v677 = vmax.f32 %v671, 0.0
      %v678 = vmax.f32 %v674, 0.0
      %v679 = vld [vmem:[%s6] sm:$0x1]
      %v681 = vperm.slane %v679, 0
      %v683 = vmul.f32 %v676, %v681
      %v684 = vmul.f32 %v677, %v681
      %v685 = vmul.f32 %v678, %v681
      %vm686 = vcmask 523264
      %v687 = vsel %vm686, %v683, 0.0
      %688 = vadd.xlane.f32.xlu0 %v687
      %v689 = vpop.xlane.xlu0 %688
      %v690 = vsel %vm686, %v684, 0.0
      %691 = vadd.xlane.f32.xlu0 %v690
      %v692 = vpop.xlane.xlu0 %691
      %v693 = vsel %vm686, %v685, 0.0
      %694 = vadd.xlane.f32.xlu0 %v693
      %v695 = vpop.xlane.xlu0 %694
      %v696 = vld [vmem:[#allocation2] sm:$0x1]
      %v698 = vperm.slane %v696, 0
      %v700 = vadd.f32 %v689, %v698
      %v701 = vadd.f32 %v692, %v698
      %v702 = vadd.f32 %v695, %v698
      %v703 = vxor.u32 %v700, 2147483648
      %v704 = vxor.u32 %v701, 2147483648
      %v705 = vxor.u32 %v702, 2147483648
      %v706 = vmul.f32 %v703, 1.442695
      %v707 = vpow.pop %v706
      %v708 = vmul.f32 %v704, 1.442695
      %v709 = vpow.pop %v708
      %v710 = vmul.f32 %v705, 1.442695
      %v711 = vpow.pop %v710
      %v712 = vadd.f32 %v707, 1.0
      %v713 = vadd.f32 %v709, 1.0
      %v714 = vadd.f32 %v711, 1.0
      %v715 = vrcp.pop %v712
      %v716 = vmul.f32 %v712, %v715
      %v717 = vsub.f32 1.0, %v716
      %v718 = vmul.f32 %v715, %v717
      %v719 = vadd.f32 %v715, %v718
      %vm720 = vweird.f32 %v712
      %vm721 = vweird.f32 %v715
      %vm722 = vmor %vm720, %vm721
      %v723 = vsel %vm722, %v715, %v719
      %v724 = vand.u32 2147483647, %v712
      %vm725 = vcmp.eq.f32.partialorder %v724, 8.507059e+37
      %v726 = vand.u32 %v712, 2147483648
      %v727 = vor.u32 1.1754944e-38, %v726
      %v728 = vsel %vm725, %v727, %v723
      %v729 = vmul.f32 1.0, %v728
      %v730 = vrcp.pop %v713
      %v731 = vmul.f32 %v713, %v730
      %v732 = vsub.f32 1.0, %v731
      %v733 = vmul.f32 %v730, %v732
      %v734 = vadd.f32 %v730, %v733
      %vm735 = vweird.f32 %v713
      %vm736 = vweird.f32 %v730
      %vm737 = vmor %vm735, %vm736
      %v738 = vsel %vm737, %v730, %v734
      %v739 = vand.u32 2147483647, %v713
      %vm740 = vcmp.eq.f32.partialorder %v739, 8.507059e+37
      %v741 = vand.u32 %v713, 2147483648
      %v742 = vor.u32 1.1754944e-38, %v741
      %v743 = vsel %vm740, %v742, %v738
      %v744 = vmul.f32 1.0, %v743
      %v745 = vrcp.pop %v714
      %v746 = vmul.f32 %v714, %v745
      %v747 = vsub.f32 1.0, %v746
      %v748 = vmul.f32 %v745, %v747
      %v749 = vadd.f32 %v745, %v748
      %vm750 = vweird.f32 %v714
      %vm751 = vweird.f32 %v745
      %vm752 = vmor %vm750, %vm751
      %v753 = vsel %vm752, %v745, %v749
      %v754 = vand.u32 2147483647, %v714
      %vm755 = vcmp.eq.f32.partialorder %v754, 8.507059e+37
      %v756 = vand.u32 %v714, 2147483648
      %v757 = vor.u32 1.1754944e-38, %v756
      %v758 = vsel %vm755, %v757, %v753
      %v759 = vmul.f32 1.0, %v758
      %vm760 = vcmask 7168
      %761 = vst.msk [vmem:[%s309] sm:$0xff] %vm760, %v729
      %762 = vst.msk [vmem:[%s309 + $0x8] sm:$0xff] %vm760, %v744
      %763 = vst.msk [vmem:[%s309 + $0x10] sm:$0xff] %vm760, %v759
      %s764 = smul.u32 3, %s21
      %p765 = scmp.lt.s32.totalorder %s764, 5
      %s766 = scalar_select %p765, %s764, 5
      %s767 = smul.addr %s766, 8
      %s768 = scalar_lea.vmem %s8, %s767
      // Predicated region
      $region53: #{tpu_custom_call.1} parent=51 // pred_check
        %p769 = pneg %p212
      $region54: #{tpu_custom_call.1} parent=51 // pred_check_branch
        %771 = sbr.rel (%p769) target = $region56
      $region55: #{tpu_custom_call.1} parent=51 // pred_region
        %s772 = smul.u32 3, %s21
      $region56: #{tpu_custom_call.1} parent=51 // pred_fallthru
        _
    $region52: #{tpu_custom_call.1} parent=5 // pred_fallthru
      _
    %p773 = scmp.le.s32.totalorder 2, %s16
    // Predicated region
    $region57: #{tpu_custom_call.1} parent=5 // pred_check
      %p774 = pneg %p773
    $region58: #{tpu_custom_call.1} parent=5 // pred_check_branch
      %776 = sbr.rel (%p774) target = $region60
    $region59: #{tpu_custom_call.1} parent=5 // pred_region
      %s777 = ssub.s32 %s16, 2
      // Predicated region
      $region61: #{tpu_custom_call.1} parent=59 // pred_check
        %p778 = pneg %p218
      $region62: #{tpu_custom_call.1} parent=59 // pred_check_branch
        %780 = sbr.rel (%p778) target = $region64
      $region63: #{tpu_custom_call.1} parent=59 // pred_region
        %s781 = smul.u32 3, %s22
        %p782 = scmp.lt.s32.totalorder %s781, 5
        %s783 = scalar_select %p782, %s781, 5
        %s784 = smul.addr %s783, 8
        %s785 = scalar_lea.vmem %s8, %s784
      $region64: #{tpu_custom_call.1} parent=59 // pred_fallthru
        _
    $region60: #{tpu_custom_call.1} parent=5 // pred_fallthru
      _
  $region6: #{tpu_custom_call.1} parent=0 // loop_footer
    %s20 = sadd.s32 1, %s16
  $region7: #{tpu_custom_call.1} parent=0 // loop_footer_branch
    %15 = sbr.rel target = $region3
  $region8: #{tpu_custom_call.1} parent=0 // loop_exit
    _

</llo_original>
